<compile_context>
chip_gen: v6e
topology: v6e:2x2x1
jax: 0.10.0
libtpu: 0.0.40
codegen_flags: <defaults>
</compile_context>

<pallas_src>
import functools
import math

import jax
import jax.numpy as jnp
from jax.experimental import pallas as pl
from jax.experimental.pallas import tpu as pltpu

HIDDEN = 256
LANE = 128            # lane-dense output padding
MAX_TILE = 2048       # cap on batch-tile rows


def _round_up(x, m):
    return ((x + m - 1) // m) * m


def _cdiv(a, b):
    return -(-a // b)


# ----------------------------- Pallas kernel ------------------------------ #
def actor_mlp_kernel(ob_ref,                      # (TB, ob_dim)   bf16  VMEM
                     w1_ref, b1_ref,              # (ob_dim,256) bf16, (1,256) bf16
                     w2_ref, b2_ref,              # (256,256)   bf16, (1,256) bf16
                     w3_ref, b3_ref,              # (256,act_pad) bf16, (1,act_pad) f32
                     out_ref,                     # (TB, act_pad)  bf16  VMEM
                     *, a_high):
    """Fused Actor MLP on one batch tile (bf16 MXU, bf16 VPU, f32 tanh path)."""
    x = ob_ref[...]                                                 # bf16

    h1 = jnp.dot(x, w1_ref[...], preferred_element_type=jnp.float32)
    h1 = jnp.maximum(h1.astype(jnp.bfloat16) + b1_ref[...], 0)      # bias+ReLU in bf16

    h2 = jnp.dot(h1, w2_ref[...], preferred_element_type=jnp.float32)
    h2 = jnp.maximum(h2.astype(jnp.bfloat16) + b2_ref[...], 0)      # bias+ReLU in bf16

    h3 = jnp.dot(h2, w3_ref[...], preferred_element_type=jnp.float32) + b3_ref[...]

    out_ref[...] = (jnp.tanh(h3) * a_high).astype(out_ref.dtype)     # tanh + scale in f32


# ------------------------------ wrapper ------------------------------------ #
def prepare_params(params_f32):
    """Cast weights/hidden biases to bf16 and pad the output layer to 128 lanes."""
    act_dim = params_f32["w3"].shape[1]
    act_pad = _round_up(act_dim, LANE)
    w3 = jnp.pad(params_f32["w3"], ((0, 0), (0, act_pad - act_dim)))
    b3 = jnp.pad(params_f32["b3"], ((0, 0), (0, act_pad - act_dim)))
    return {
        "w1": params_f32["w1"].astype(jnp.bfloat16),
        "b1": params_f32["b1"].astype(jnp.bfloat16),
        "w2": params_f32["w2"].astype(jnp.bfloat16),
        "b2": params_f32["b2"].astype(jnp.bfloat16),
        "w3": w3.astype(jnp.bfloat16),
        "b3": b3.astype(jnp.float32),          # final-layer bias stays f32
    }


def _batch_tiling(B):
    """Pad B to a multiple of 8; pick tile so grid has 1 step (small B) or
    ~2 steps (large B, one per TensorCore on v7x), tile capped at MAX_TILE."""
    b_pad = _round_up(max(B, 8), 8)
    if b_pad <= 512:
        tb = b_pad                                  # single grid step
    else:
        n_tiles = max(2, _cdiv(b_pad, MAX_TILE))    # >=2 steps for megacore
        tb = _round_up(_cdiv(b_pad, n_tiles), 8)
        b_pad = _round_up(b_pad, tb)
    return b_pad, tb


@functools.partial(jax.jit, static_argnames=("a_high", "act_dim"))
def ddpg_forward(ob, params, a_high, act_dim):
    """Runs the fused Actor MLP as one Pallas call with a batch grid.

    ob:      (B, ob_dim) float32
    params:  prepare_params() output (bf16 weights, padded layer 3)
    a_high:  python float (action scale), static
    act_dim: python int, static
    """
    B, ob_dim = ob.shape
    act_pad = params["w3"].shape[1]

    b_pad, tb = _batch_tiling(B)

    ob = ob.astype(jnp.bfloat16)            # cast once in the wrapper, not per tile
    if b_pad != B:
        ob = jnp.pad(ob, ((0, b_pad - B), (0, 0)))

    grid = (b_pad // tb,)
    const = lambda i: (0, 0)   # weights/biases: same block every step -> VMEM-resident

    out = pl.pallas_call(
        functools.partial(actor_mlp_kernel, a_high=a_high),
        out_shape=jax.ShapeDtypeStruct((b_pad, act_pad), jnp.bfloat16),
        grid=grid,
        in_specs=[
            pl.BlockSpec((tb, ob_dim), lambda i: (i, 0)),   # ob tile
            pl.BlockSpec((ob_dim, HIDDEN), const),          # w1
            pl.BlockSpec((1, HIDDEN), const),               # b1
            pl.BlockSpec((HIDDEN, HIDDEN), const),          # w2
            pl.BlockSpec((1, HIDDEN), const),               # b2
            pl.BlockSpec((HIDDEN, act_pad), const),         # w3 (lane-padded)
            pl.BlockSpec((1, act_pad), const),              # b3 (lane-padded, f32)
        ],
        out_specs=pl.BlockSpec((tb, act_pad), lambda i: (i, 0)),
        compiler_params=pltpu.CompilerParams(
            dimension_semantics=("parallel",),              # 2 TCs on v7x
            vmem_limit_bytes=32 * 1024 * 1024,
        ),
    )(ob, params["w1"], params["b1"], params["w2"], params["b2"],
      params["w3"], params["b3"])

    return out[:B, :act_dim].astype(jnp.float32)


# --------------------------- parameter init -------------------------------- #
def xavier_normal(key, fan_in, fan_out):
    # Matches nn.init.xavier_normal_ in Actor.init_weights()
    std = math.sqrt(2.0 / (fan_in + fan_out))
    return std * jax.random.normal(key, (fan_in, fan_out), dtype=jnp.float32)


def torch_linear_bias(key, fan_in, fan_out):
    # PyTorch default bias init: U(-1/sqrt(fan_in), 1/sqrt(fan_in))
    bound = 1.0 / math.sqrt(fan_in)
    return jax.random.uniform(key, (1, fan_out), dtype=jnp.float32,
                              minval=-bound, maxval=bound)


def init_actor_params(key, ob_dim, act_dim, hidden=HIDDEN):
    ks = jax.random.split(key, 6)
    return {
        "w1": xavier_normal(ks[0], ob_dim, hidden),
        "b1": torch_linear_bias(ks[1], ob_dim, hidden),
        "w2": xavier_normal(ks[2], hidden, hidden),
        "b2": torch_linear_bias(ks[3], hidden, hidden),
        "w3": xavier_normal(ks[4], hidden, act_dim),
        "b3": torch_linear_bias(ks[5], hidden, act_dim),
    }


# --------------------------- reference (JAX, f32) --------------------------- #
def actor_ref(ob, p, a_high):
    h1 = jnp.maximum(ob @ p["w1"] + p["b1"], 0.0)
    h2 = jnp.maximum(h1 @ p["w2"] + p["b2"], 0.0)
    return jnp.tanh(h2 @ p["w3"] + p["b3"]) * a_high


# --------------------------------- main ------------------------------------- #
if __name__ == "__main__":
    key = jax.random.PRNGKey(0)
    k_params, k_ob, k_ob2 = jax.random.split(key, 3)

    B, OB_DIM, ACT_DIM = 2, 8, 4          # small env-like shapes
    A_HIGH = 2.0                          # config.a_high

    params_f32 = init_actor_params(k_params, OB_DIM, ACT_DIM)
    params = prepare_params(params_f32)

    # Inference-style tiny batch (latency path): 1 grid step, 8-row tile.
    ob = jax.random.normal(k_ob, (B, OB_DIM), dtype=jnp.float32)
    out = jax.block_until_ready(ddpg_forward(ob, params, A_HIGH, ACT_DIM))
    ref = actor_ref(ob, params_f32, A_HIGH)
    assert out.shape == (B, ACT_DIM)
    # bf16 matmul inputs / bf16 output slab -> relaxed tolerance vs f32 reference.
    assert jnp.allclose(out, ref, atol=3e-2, rtol=3e-2), "mismatch vs reference (small B)"

    # Training-style batch exercises the batch grid (2 steps, one per TC on v7x).
    B2 = 1024
    ob2 = jax.random.normal(k_ob2, (B2, OB_DIM), dtype=jnp.float32)
    out2 = jax.block_until_ready(ddpg_forward(ob2, params, A_HIGH, ACT_DIM))
    ref2 = actor_ref(ob2, params_f32, A_HIGH)
    assert out2.shape == (B2, ACT_DIM)
    assert jnp.allclose(out2, ref2, atol=3e-2, rtol=3e-2), "mismatch vs reference (large B)"

    # TODO(synk): DDPG training machinery (QNet update, replay buffer, Adam,
    # soft_update, env loop) is host-side logic, not part of forward(); only
    # the Actor forward pass is implemented as a Pallas kernel.

    print("KERNEL_OK")
</pallas_src>

<mosaic_0001>
module attributes {stable_mosaic.version = 11 : i64} {
  func.func @actor_mlp_kernel(%arg0: i32, %arg1: memref<8x8xbf16, #tpu.memory_space<vmem>>, %arg2: memref<8x256xbf16, #tpu.memory_space<vmem>>, %arg3: memref<1x256xbf16, #tpu.memory_space<vmem>>, %arg4: memref<256x256xbf16, #tpu.memory_space<vmem>>, %arg5: memref<1x256xbf16, #tpu.memory_space<vmem>>, %arg6: memref<256x128xbf16, #tpu.memory_space<vmem>>, %arg7: memref<1x128xf32, #tpu.memory_space<vmem>>, %arg8: memref<8x128xbf16, #tpu.memory_space<vmem>>) attributes {dimension_semantics = [#tpu.dimension_semantics<parallel>], iteration_bounds = array<i64: 1>, scalar_prefetch = 0 : i64, scratch_operands = 0 : i64, tpu.core_type = #tpu.core_type<tc>, window_params = [{transform_indices = @transform_0, window_bounds = array<i64: 8, 8>}, {pipeline_mode = #tpu.pipeline_mode<synchronous>, transform_indices = @transform_1, window_bounds = array<i64: 8, 256>}, {pipeline_mode = #tpu.pipeline_mode<synchronous>, transform_indices = @transform_2, window_bounds = array<i64: 1, 256>}, {pipeline_mode = #tpu.pipeline_mode<synchronous>, transform_indices = @transform_3, window_bounds = array<i64: 256, 256>}, {pipeline_mode = #tpu.pipeline_mode<synchronous>, transform_indices = @transform_4, window_bounds = array<i64: 1, 256>}, {pipeline_mode = #tpu.pipeline_mode<synchronous>, transform_indices = @transform_5, window_bounds = array<i64: 256, 128>}, {pipeline_mode = #tpu.pipeline_mode<synchronous>, transform_indices = @transform_6, window_bounds = array<i64: 1, 128>}, {transform_indices = @transform_7, window_bounds = array<i64: 8, 128>}]} {
    %c0 = arith.constant 0 : index
    %c0_0 = arith.constant 0 : index
    %0 = vector.load %arg1[%c0, %c0_0] : memref<8x8xbf16, #tpu.memory_space<vmem>>, vector<8x8xbf16>
    %c0_1 = arith.constant 0 : index
    %c0_2 = arith.constant 0 : index
    %1 = vector.load %arg2[%c0_1, %c0_2] : memref<8x256xbf16, #tpu.memory_space<vmem>>, vector<8x256xbf16>
    %cst = arith.constant dense<0.000000e+00> : vector<8x256xf32>
    %2 = tpu.matmul %0, %1, %cst {dimension_numbers = #tpu.dot_dimension_numbers<[1], [0], [0], [1], [0, 0, 1, 1], [], []>} : vector<8x8xbf16>, vector<8x256xbf16>, vector<8x256xf32> -> vector<8x256xf32>
    %3 = arith.truncf %2 : vector<8x256xf32> to vector<8x256xbf16>
    %c0_3 = arith.constant 0 : index
    %c0_4 = arith.constant 0 : index
    %4 = vector.load %arg3[%c0_3, %c0_4] : memref<1x256xbf16, #tpu.memory_space<vmem>>, vector<1x256xbf16>
    %5 = vector.broadcast %4 : vector<1x256xbf16> to vector<8x256xbf16>
    %6 = arith.addf %3, %5 : vector<8x256xbf16>
    %cst_5 = arith.constant 0.000000e+00 : bf16
    %7 = vector.broadcast %cst_5 : bf16 to vector<8x256xbf16>
    %8 = arith.maximumf %6, %7 : vector<8x256xbf16>
    %c0_6 = arith.constant 0 : index
    %c0_7 = arith.constant 0 : index
    %9 = vector.load %arg4[%c0_6, %c0_7] : memref<256x256xbf16, #tpu.memory_space<vmem>>, vector<256x256xbf16>
    %cst_8 = arith.constant dense<0.000000e+00> : vector<8x256xf32>
    %10 = tpu.matmul %8, %9, %cst_8 {dimension_numbers = #tpu.dot_dimension_numbers<[1], [0], [0], [1], [0, 0, 1, 1], [], []>} : vector<8x256xbf16>, vector<256x256xbf16>, vector<8x256xf32> -> vector<8x256xf32>
    %11 = arith.truncf %10 : vector<8x256xf32> to vector<8x256xbf16>
    %c0_9 = arith.constant 0 : index
    %c0_10 = arith.constant 0 : index
    %12 = vector.load %arg5[%c0_9, %c0_10] : memref<1x256xbf16, #tpu.memory_space<vmem>>, vector<1x256xbf16>
    %13 = vector.broadcast %12 : vector<1x256xbf16> to vector<8x256xbf16>
    %14 = arith.addf %11, %13 : vector<8x256xbf16>
    %cst_11 = arith.constant 0.000000e+00 : bf16
    %15 = vector.broadcast %cst_11 : bf16 to vector<8x256xbf16>
    %16 = arith.maximumf %14, %15 : vector<8x256xbf16>
    %c0_12 = arith.constant 0 : index
    %c0_13 = arith.constant 0 : index
    %17 = vector.load %arg6[%c0_12, %c0_13] : memref<256x128xbf16, #tpu.memory_space<vmem>>, vector<256x128xbf16>
    %cst_14 = arith.constant dense<0.000000e+00> : vector<8x128xf32>
    %18 = tpu.matmul %16, %17, %cst_14 {dimension_numbers = #tpu.dot_dimension_numbers<[1], [0], [0], [1], [0, 0, 1, 1], [], []>} : vector<8x256xbf16>, vector<256x128xbf16>, vector<8x128xf32> -> vector<8x128xf32>
    %c0_15 = arith.constant 0 : index
    %c0_16 = arith.constant 0 : index
    %19 = vector.load %arg7[%c0_15, %c0_16] : memref<1x128xf32, #tpu.memory_space<vmem>>, vector<1x128xf32>
    %20 = vector.broadcast %19 : vector<1x128xf32> to vector<8x128xf32>
    %21 = arith.addf %18, %20 : vector<8x128xf32>
    %22 = math.tanh %21 : vector<8x128xf32>
    %cst_17 = arith.constant 2.000000e+00 : f32
    %23 = vector.broadcast %cst_17 : f32 to vector<8x128xf32>
    %24 = arith.mulf %22, %23 : vector<8x128xf32>
    %25 = arith.truncf %24 : vector<8x128xf32> to vector<8x128xbf16>
    %c0_18 = arith.constant 0 : index
    %c0_19 = arith.constant 0 : index
    %26 = vector.load %arg8[%c0_18, %c0_19] : memref<8x128xbf16, #tpu.memory_space<vmem>>, vector<8x128xbf16>
    tpu.vector_store %arg8[%c0_18, %c0_19], %25 {strides = array<i32>} : memref<8x128xbf16, #tpu.memory_space<vmem>>, vector<8x128xbf16>,
    return
  }
  func.func @transform_0(%arg0: i32) -> (i32, i32) {
    %c0_i32 = arith.constant 0 : i32
    %c0_i32_0 = arith.constant 0 : i32
    return %arg0, %c0_i32 : i32, i32
  }
  func.func @transform_1(%arg0: i32) -> (i32, i32) {
    %c0_i32 = arith.constant 0 : i32
    %c0_i32_0 = arith.constant 0 : i32
    %c0_i32_1 = arith.constant 0 : i32
    return %c0_i32, %c0_i32_0 : i32, i32
  }
  func.func @transform_2(%arg0: i32) -> (i32, i32) {
    %c0_i32 = arith.constant 0 : i32
    %c0_i32_0 = arith.constant 0 : i32
    %c0_i32_1 = arith.constant 0 : i32
    return %c0_i32, %c0_i32_0 : i32, i32
  }
  func.func @transform_3(%arg0: i32) -> (i32, i32) {
    %c0_i32 = arith.constant 0 : i32
    %c0_i32_0 = arith.constant 0 : i32
    %c0_i32_1 = arith.constant 0 : i32
    return %c0_i32, %c0_i32_0 : i32, i32
  }
  func.func @transform_4(%arg0: i32) -> (i32, i32) {
    %c0_i32 = arith.constant 0 : i32
    %c0_i32_0 = arith.constant 0 : i32
    %c0_i32_1 = arith.constant 0 : i32
    return %c0_i32, %c0_i32_0 : i32, i32
  }
  func.func @transform_5(%arg0: i32) -> (i32, i32) {
    %c0_i32 = arith.constant 0 : i32
    %c0_i32_0 = arith.constant 0 : i32
    %c0_i32_1 = arith.constant 0 : i32
    return %c0_i32, %c0_i32_0 : i32, i32
  }
  func.func @transform_6(%arg0: i32) -> (i32, i32) {
    %c0_i32 = arith.constant 0 : i32
    %c0_i32_0 = arith.constant 0 : i32
    %c0_i32_1 = arith.constant 0 : i32
    return %c0_i32, %c0_i32_0 : i32, i32
  }
  func.func @transform_7(%arg0: i32) -> (i32, i32) {
    %c0_i32 = arith.constant 0 : i32
    %c0_i32_0 = arith.constant 0 : i32
    return %arg0, %c0_i32 : i32, i32
  }
}

</mosaic_0001>

<llo_original>
// kernel: ddpg_forward.1
$region0: #{ddpg_forward.1}
  #allocation0 [shape = 'u32[]', space=smem, size = 0x4, offset = 0x4, fixed_abs, tag = 'smem constant byte address 0x4 - core index']
  #allocation1 [shape = 'u32[144,128]{1,0:T(1,128)}', space=vmem, size = 0x12000, scoped, tag = 'internal scratch']
  %s0 = inlined_call_operand.vmem [shape: bf16[8,8], index: 0, kind: input, shape index: {}]
  %s1 = inlined_call_operand.vmem [shape: bf16[8,256], index: 1, kind: input, shape index: {}]
  %s2 = inlined_call_operand.vmem [shape: bf16[1,256], index: 2, kind: input, shape index: {}]
  %s3 = inlined_call_operand.hbm [shape: bf16[256,256], index: 3, kind: input, shape index: {}]
  %s4 = inlined_call_operand.vmem [shape: bf16[1,256], index: 4, kind: input, shape index: {}]
  %s5 = inlined_call_operand.hbm [shape: bf16[256,128], index: 5, kind: input, shape index: {}]
  %s6 = inlined_call_operand.vmem [shape: f32[1,128], index: 6, kind: input, shape index: {}]
  %s7 = inlined_call_operand.vmem [shape: bf16[8,128], index: 7, kind: output, shape index: {}]
  %s8 = sld [smem:[#allocation0]]
  $region46: #{ddpg_forward.1} parent=0
    _
  %s10 = ssub.s32 1, %s8
  %s11 = scalar_select 0, %s10, %s8
  $region1: #{ddpg_forward.1} parent=0
    #allocation2 [shape = 'u8[131072]{0}', space=vmem, size = 0x20000, scoped, tag = 'input window, operand 3, single buffered']
    #allocation3 [shape = 's32[1]{0}', space=sflag, size = 0x4, scoped, tag = 'scoped memory for ddpg_forward.1']
    #allocation4 [shape = 'u8[65536]{0}', space=vmem, size = 0x10000, scoped, tag = 'input window, operand 5, single buffered']
    #allocation5 [shape = 's32[1]{0}', space=sflag, size = 0x4, scoped, tag = 'scoped memory for ddpg_forward.1']
    %12 = vsyncpa [#allocation3], 0
    %13 = vsyncpa [#allocation5], 0
    // Predicated region
    $region2: #{ddpg_forward.1} parent=1 // pred_check
      _
    $region3: #{ddpg_forward.1} parent=1 // pred_check_branch
      %15 = sbr.rel (0) target = $region5
    $region4: #{ddpg_forward.1} parent=1 // pred_region
      _
    $region5: #{ddpg_forward.1} parent=1 // pred_fallthru
      _
    // Predicated region
    $region6: #{ddpg_forward.1} parent=1 // pred_check
      _
    $region7: #{ddpg_forward.1} parent=1 // pred_check_branch
      %17 = sbr.rel (0) target = $region9
    $region8: #{ddpg_forward.1} parent=1 // pred_region
      _
    $region9: #{ddpg_forward.1} parent=1 // pred_fallthru
      _
    // Predicated region
    $region10: #{ddpg_forward.1} parent=1 // pred_check
      _
    $region11: #{ddpg_forward.1} parent=1 // pred_check_branch
      %19 = sbr.rel (0) target = $region13
    $region12: #{ddpg_forward.1} parent=1 // pred_region
      _
    $region13: #{ddpg_forward.1} parent=1 // pred_fallthru
      _
    // Predicated region
    $region14: #{ddpg_forward.1} parent=1 // pred_check
      _
    $region15: #{ddpg_forward.1} parent=1 // pred_check_branch
      %21 = sbr.rel (0) target = $region17
    $region16: #{ddpg_forward.1} parent=1 // pred_region
      %s23 = ssub.s32 4096, 4096
      %24 = vsyncadd [#allocation3], %s23
      %s25 = sshll.u32 [#allocation2], 4
      %s26 = int_to_ptr.vmem [resolvable:$true] %s25
      %31 = dma.hbm_to_vmem [thread:$0]  %s3, 4096, %s26, [#allocation3], 128, 128, 8
    $region17: #{ddpg_forward.1} parent=1 // pred_fallthru
      _
    // Predicated region
    $region18: #{ddpg_forward.1} parent=1 // pred_check
      _
    $region19: #{ddpg_forward.1} parent=1 // pred_check_branch
      %33 = sbr.rel (0) target = $region21
    $region20: #{ddpg_forward.1} parent=1 // pred_region
      _
    $region21: #{ddpg_forward.1} parent=1 // pred_fallthru
      _
    // Predicated region
    $region22: #{ddpg_forward.1} parent=1 // pred_check
      _
    $region23: #{ddpg_forward.1} parent=1 // pred_check_branch
      %35 = sbr.rel (0) target = $region25
    $region24: #{ddpg_forward.1} parent=1 // pred_region
      %s37 = ssub.s32 2048, 2048
      %38 = vsyncadd [#allocation5], %s37
      %s39 = sshll.u32 [#allocation4], 4
      %s40 = int_to_ptr.vmem [resolvable:$true] %s39
      %45 = dma.hbm_to_vmem [thread:$0]  %s5, 2048, %s40, [#allocation5], 64, 64, 4
    $region25: #{ddpg_forward.1} parent=1 // pred_fallthru
      _
    // Predicated region
    $region26: #{ddpg_forward.1} parent=1 // pred_check
      _
    $region27: #{ddpg_forward.1} parent=1 // pred_check_branch
      %47 = sbr.rel (0) target = $region29
    $region28: #{ddpg_forward.1} parent=1 // pred_region
      _
    $region29: #{ddpg_forward.1} parent=1 // pred_fallthru
      _
    // Predicated region
    $region30: #{ddpg_forward.1} parent=1 // pred_check
      _
    $region31: #{ddpg_forward.1} parent=1 // pred_check_branch
      %49 = sbr.rel (0) target = $region33
    $region32: #{ddpg_forward.1} parent=1 // pred_region
      %50 = dma.done [#allocation3], 4096
    $region33: #{ddpg_forward.1} parent=1 // pred_fallthru
      _
    // Predicated region
    $region34: #{ddpg_forward.1} parent=1 // pred_check
      _
    $region35: #{ddpg_forward.1} parent=1 // pred_check_branch
      %52 = sbr.rel (0) target = $region37
    $region36: #{ddpg_forward.1} parent=1 // pred_region
      %53 = dma.done [#allocation5], 2048
    $region37: #{ddpg_forward.1} parent=1 // pred_fallthru
      _
    %v55 = vld [vmem:[%s0] sm:$0xf]
    %v56 = vld [vmem:[%s1] sm:$0xff]
    %v58 = vunpack.c.l.b16 %v56
    %v59 = vunpack.c.h.b16 %v56
    %v60 = vpack.c.b16 %v58, %v58
    %v61 = vpack.c.b16 %v59, %v59
    %vm62 = vcmask 64512
    %v64 = vsel %vm62, %v55, 0
    %vm66 = vcmask 1043456
    %v68 = vsel %vm66, %v60, 0
    %v71 = vsel %vm66, %v61, 0
    %73 = vmatprep.subr.bf16.mxu0 0
    %74 = vmatpush1.bf16.msra.mxu0 0
    %75 = vmatprep.subr.bf16.mxu0 0
    %76 = vmatpush1.bf16.msra.mxu0 0
    %77 = vmatprep.subr.bf16.mxu0 0
    %78 = vmatpush1.bf16.msra.mxu0 0
    %79 = vmatprep.subr.bf16.mxu0 0
    %80 = vmatpush1.bf16.msra.mxu0 0
    %81 = vmatprep.subr.bf16.mxu0 0
    %82 = vmatpush1.bf16.msra.mxu0 0
    %83 = vmatprep.subr.bf16.mxu0 0
    %84 = vmatpush1.bf16.msra.mxu0 0
    %85 = vmatprep.subr.bf16.mxu0 0
    %86 = vmatpush1.bf16.msra.mxu0 0
    %87 = vmatprep.subr.bf16.mxu0 %v71
    %88 = vmatpush1.bf16.msra.mxu0 %v68
    %89 = vmatprep.subr.bf16.mxu0 0
    %90 = vmatpush2.bf16.msra.mxu0 0
    %91 = vmatprep.subr.bf16.mxu0 0
    %92 = vmatpush2.bf16.msra.mxu0 0
    %93 = vmatprep.subr.bf16.mxu0 0
    %94 = vmatpush2.bf16.msra.mxu0 0
    %95 = vmatprep.subr.bf16.mxu0 0
    %96 = vmatpush2.bf16.msra.mxu0 0
    %97 = vmatprep.subr.bf16.mxu0 0
    %98 = vmatpush2.bf16.msra.mxu0 0
    %99 = vmatprep.subr.bf16.mxu0 0
    %100 = vmatpush2.bf16.msra.mxu0 0
    %101 = vmatprep.subr.bf16.mxu0 0
    %102 = vmatpush2.bf16.msra.mxu0 0
    %103 = vmatprep.subr.bf16.mxu0 0
    %104 = vmatpush2.bf16.msra.mxu0 0
    %105 = vmatprep.mubr.bf16.mxu0 0
    %106 = vmatmul.mubr.bf16.gmra.mxu0 %v64
    %v107 = vpop.f32.mrf.mxu0
    %v108 = vadd.f32 0.0, %v107
    %v109 = vpop.f32.mrf.mxu0
    %v110 = vadd.f32 0.0, %v109
    %v111 = vpop.f32.mrf.mxu0
    %v112 = vpop.f32.mrf.mxu0
    %113 = vdwg.mxu0
    %v114 = vpack.c.bf16 %v108, %v108
    %v115 = vpack.c.bf16 %v110, %v110
    %v116 = vld [vmem:[%s2] sm:$0x3]
    %v119 = vunpack.c.l.s4 1966171168
    %v120 = vunpack.c.0.s8 %v119
    %v121 = vlaneseq
    %v122 = vshrl.u32 %v121, 7
    %v123 = vsub.s32 %v120, %v122
    %v124 = vrot.slane %v116, %v123
    %v125 = vcombine.high %v124, %v124
    %v127 = vunpack.c.l.s4 1966171168
    %v128 = vunpack.c.0.s8 %v127
    %v129 = vlaneseq
    %v130 = vshrl.u32 %v129, 7
    %v131 = vsub.s32 %v128, %v130
    %v132 = vrot.slane %v124, %v131
    %v134 = vunpack.c.l.s4 1966171168
    %v135 = vunpack.c.0.s8 %v134
    %v136 = vlaneseq
    %v137 = vshrl.u32 %v136, 7
    %v138 = vsub.s32 %v135, %v137
    %v139 = vrot.slane %v125, %v138
    %v141 = vpack.i.b16 %v132, %v132
    %v143 = vlaneseq
    %v144 = vshrl.u32 %v143, 7
    %v145 = vsub.s32 0, %v144
    %v146 = vrot.slane %v141, %v145
    %v148 = vpack.i.b16 %v139, %v139
    %v150 = vlaneseq
    %v151 = vshrl.u32 %v150, 7
    %v152 = vsub.s32 0, %v151
    %v153 = vrot.slane %v148, %v152
    %v154 = vadd.bf16 %v114, %v146
    %v155 = vadd.bf16 %v115, %v153
    %v156 = vmax.bf16 %v154, 0
    %v157 = vmax.bf16 %v155, 0
    %v158 = vld [vmem:[#allocation2] sm:$0xff]
    %v159 = vld [vmem:[#allocation2 + $0x8] sm:$0xff]
    %v160 = vld [vmem:[#allocation2 + $0x10] sm:$0xff]
    %v161 = vld [vmem:[#allocation2 + $0x18] sm:$0xff]
    %v162 = vld [vmem:[#allocation2 + $0x20] sm:$0xff]
    %v163 = vld [vmem:[#allocation2 + $0x28] sm:$0xff]
    %v164 = vld [vmem:[#allocation2 + $0x30] sm:$0xff]
    %v165 = vld [vmem:[#allocation2 + $0x38] sm:$0xff]
    %v166 = vld [vmem:[#allocation2 + $0x40] sm:$0xff]
    %v167 = vld [vmem:[#allocation2 + $0x48] sm:$0xff]
    %v168 = vld [vmem:[#allocation2 + $0x50] sm:$0xff]
    %v169 = vld [vmem:[#allocation2 + $0x58] sm:$0xff]
    %v170 = vld [vmem:[#allocation2 + $0x60] sm:$0xff]
    %v171 = vld [vmem:[#allocation2 + $0x68] sm:$0xff]
    %v172 = vld [vmem:[#allocation2 + $0x70] sm:$0xff]
    %v173 = vld [vmem:[#allocation2 + $0x78] sm:$0xff]
    %v174 = vld [vmem:[#allocation2 + $0x80] sm:$0xff]
    %v175 = vld [vmem:[#allocation2 + $0x88] sm:$0xff]
    %v176 = vld [vmem:[#allocation2 + $0x90] sm:$0xff]
    %v177 = vld [vmem:[#allocation2 + $0x98] sm:$0xff]
    %v178 = vld [vmem:[#allocation2 + $0xa0] sm:$0xff]
    %v179 = vld [vmem:[#allocation2 + $0xa8] sm:$0xff]
    %v180 = vld [vmem:[#allocation2 + $0xb0] sm:$0xff]
    %v181 = vld [vmem:[#allocation2 + $0xb8] sm:$0xff]
    %v182 = vld [vmem:[#allocation2 + $0xc0] sm:$0xff]
    %v183 = vld [vmem:[#allocation2 + $0xc8] sm:$0xff]
    %v184 = vld [vmem:[#allocation2 + $0xd0] sm:$0xff]
    %v185 = vld [vmem:[#allocation2 + $0xd8] sm:$0xff]
    %v186 = vld [vmem:[#allocation2 + $0xe0] sm:$0xff]
    %v187 = vld [vmem:[#allocation2 + $0xe8] sm:$0xff]
    %v188 = vld [vmem:[#allocation2 + $0xf0] sm:$0xff]
    %v189 = vld [vmem:[#allocation2 + $0xf8] sm:$0xff]
    %v222 = vunpack.c.l.b16 %v158
    %v223 = vunpack.c.h.b16 %v158
    %v224 = vunpack.c.l.b16 %v159
    %v225 = vunpack.c.h.b16 %v159
    %v226 = vunpack.c.l.b16 %v160
    %v227 = vunpack.c.h.b16 %v160
    %v228 = vunpack.c.l.b16 %v161
    %v229 = vunpack.c.h.b16 %v161
    %v230 = vunpack.c.l.b16 %v162
    %v231 = vunpack.c.h.b16 %v162
    %v232 = vunpack.c.l.b16 %v163
    %v233 = vunpack.c.h.b16 %v163
    %v234 = vunpack.c.l.b16 %v164
    %v235 = vunpack.c.h.b16 %v164
    %v236 = vunpack.c.l.b16 %v165
    %v237 = vunpack.c.h.b16 %v165
    %v238 = vunpack.c.l.b16 %v166
    %v239 = vunpack.c.h.b16 %v166
    %v240 = vunpack.c.l.b16 %v167
    %v241 = vunpack.c.h.b16 %v167
    %v242 = vunpack.c.l.b16 %v168
    %v243 = vunpack.c.h.b16 %v168
    %v244 = vunpack.c.l.b16 %v169
    %v245 = vunpack.c.h.b16 %v169
    %v246 = vunpack.c.l.b16 %v170
    %v247 = vunpack.c.h.b16 %v170
    %v248 = vunpack.c.l.b16 %v171
    %v249 = vunpack.c.h.b16 %v171
    %v250 = vunpack.c.l.b16 %v172
    %v251 = vunpack.c.h.b16 %v172
    %v252 = vunpack.c.l.b16 %v173
    %v253 = vunpack.c.h.b16 %v173
    %v254 = vunpack.c.l.b16 %v174
    %v255 = vunpack.c.h.b16 %v174
    %v256 = vunpack.c.l.b16 %v175
    %v257 = vunpack.c.h.b16 %v175
    %v258 = vunpack.c.l.b16 %v176
    %v259 = vunpack.c.h.b16 %v176
    %v260 = vunpack.c.l.b16 %v177
    %v261 = vunpack.c.h.b16 %v177
    %v262 = vunpack.c.l.b16 %v178
    %v263 = vunpack.c.h.b16 %v178
    %v264 = vunpack.c.l.b16 %v179
    %v265 = vunpack.c.h.b16 %v179
    %v266 = vunpack.c.l.b16 %v180
    %v267 = vunpack.c.h.b16 %v180
    %v268 = vunpack.c.l.b16 %v181
    %v269 = vunpack.c.h.b16 %v181
    %v270 = vunpack.c.l.b16 %v182
    %v271 = vunpack.c.h.b16 %v182
    %v272 = vunpack.c.l.b16 %v183
    %v273 = vunpack.c.h.b16 %v183
    %v274 = vunpack.c.l.b16 %v184
    %v275 = vunpack.c.h.b16 %v184
    %v276 = vunpack.c.l.b16 %v185
    %v277 = vunpack.c.h.b16 %v185
    %v278 = vunpack.c.l.b16 %v186
    %v279 = vunpack.c.h.b16 %v186
    %v280 = vunpack.c.l.b16 %v187
    %v281 = vunpack.c.h.b16 %v187
    %v282 = vunpack.c.l.b16 %v188
    %v283 = vunpack.c.h.b16 %v188
    %v284 = vunpack.c.l.b16 %v189
    %v285 = vunpack.c.h.b16 %v189
    %v286 = vpack.c.b16 %v224, %v222
    %v287 = vpack.c.b16 %v225, %v223
    %v288 = vpack.c.b16 %v228, %v226
    %v289 = vpack.c.b16 %v229, %v227
    %v290 = vpack.c.b16 %v232, %v230
    %v291 = vpack.c.b16 %v233, %v231
    %v292 = vpack.c.b16 %v236, %v234
    %v293 = vpack.c.b16 %v237, %v235
    %v294 = vpack.c.b16 %v240, %v238
    %v295 = vpack.c.b16 %v241, %v239
    %v296 = vpack.c.b16 %v244, %v242
    %v297 = vpack.c.b16 %v245, %v243
    %v298 = vpack.c.b16 %v248, %v246
    %v299 = vpack.c.b16 %v249, %v247
    %v300 = vpack.c.b16 %v252, %v250
    %v301 = vpack.c.b16 %v253, %v251
    %v302 = vpack.c.b16 %v256, %v254
    %v303 = vpack.c.b16 %v257, %v255
    %v304 = vpack.c.b16 %v260, %v258
    %v305 = vpack.c.b16 %v261, %v259
    %v306 = vpack.c.b16 %v264, %v262
    %v307 = vpack.c.b16 %v265, %v263
    %v308 = vpack.c.b16 %v268, %v266
    %v309 = vpack.c.b16 %v269, %v267
    %v310 = vpack.c.b16 %v272, %v270
    %v311 = vpack.c.b16 %v273, %v271
    %v312 = vpack.c.b16 %v276, %v274
    %v313 = vpack.c.b16 %v277, %v275
    %v314 = vpack.c.b16 %v280, %v278
    %v315 = vpack.c.b16 %v281, %v279
    %v316 = vpack.c.b16 %v284, %v282
    %v317 = vpack.c.b16 %v285, %v283
    %350 = vmatprep.subr.bf16.mxu0 %v301
    %351 = vmatpush1.bf16.msra.mxu0 %v300
    %352 = vmatprep.subr.bf16.mxu0 %v299
    %353 = vmatpush1.bf16.msra.mxu0 %v298
    %354 = vmatprep.subr.bf16.mxu0 %v297
    %355 = vmatpush1.bf16.msra.mxu0 %v296
    %356 = vmatprep.subr.bf16.mxu0 %v295
    %357 = vmatpush1.bf16.msra.mxu0 %v294
    %358 = vmatprep.subr.bf16.mxu0 %v293
    %359 = vmatpush1.bf16.msra.mxu0 %v292
    %360 = vmatprep.subr.bf16.mxu0 %v291
    %361 = vmatpush1.bf16.msra.mxu0 %v290
    %362 = vmatprep.subr.bf16.mxu0 %v289
    %363 = vmatpush1.bf16.msra.mxu0 %v288
    %364 = vmatprep.subr.bf16.mxu0 %v287
    %365 = vmatpush1.bf16.msra.mxu0 %v286
    %366 = vmatprep.subr.bf16.mxu0 %v317
    %367 = vmatpush2.bf16.msra.mxu0 %v316
    %368 = vmatprep.subr.bf16.mxu0 %v315
    %369 = vmatpush2.bf16.msra.mxu0 %v314
    %370 = vmatprep.subr.bf16.mxu0 %v313
    %371 = vmatpush2.bf16.msra.mxu0 %v312
    %372 = vmatprep.subr.bf16.mxu0 %v311
    %373 = vmatpush2.bf16.msra.mxu0 %v310
    %374 = vmatprep.subr.bf16.mxu0 %v309
    %375 = vmatpush2.bf16.msra.mxu0 %v308
    %376 = vmatprep.subr.bf16.mxu0 %v307
    %377 = vmatpush2.bf16.msra.mxu0 %v306
    %378 = vmatprep.subr.bf16.mxu0 %v305
    %379 = vmatpush2.bf16.msra.mxu0 %v304
    %380 = vmatprep.subr.bf16.mxu0 %v303
    %381 = vmatpush2.bf16.msra.mxu0 %v302
    %382 = vmatprep.mubr.bf16.mxu0 %v157
    %383 = vmatmul.mubr.bf16.gmra.mxu0 %v156
    %v384 = vpop.f32.mrf.mxu0
    %v385 = vadd.f32 0.0, %v384
    %v386 = vpop.f32.mrf.mxu0
    %v387 = vadd.f32 0.0, %v386
    %v388 = vpop.f32.mrf.mxu0
    %v389 = vpop.f32.mrf.mxu0
    %390 = vdwg.mxu0
    %v391 = vpack.c.bf16 %v385, %v385
    %v392 = vpack.c.bf16 %v387, %v387
    %v393 = vld [vmem:[%s4] sm:$0x3]
    %v396 = vunpack.c.l.s4 1966171168
    %v397 = vunpack.c.0.s8 %v396
    %v398 = vlaneseq
    %v399 = vshrl.u32 %v398, 7
    %v400 = vsub.s32 %v397, %v399
    %v401 = vrot.slane %v393, %v400
    %v402 = vcombine.high %v401, %v401
    %v404 = vunpack.c.l.s4 1966171168
    %v405 = vunpack.c.0.s8 %v404
    %v406 = vlaneseq
    %v407 = vshrl.u32 %v406, 7
    %v408 = vsub.s32 %v405, %v407
    %v409 = vrot.slane %v401, %v408
    %v411 = vunpack.c.l.s4 1966171168
    %v412 = vunpack.c.0.s8 %v411
    %v413 = vlaneseq
    %v414 = vshrl.u32 %v413, 7
    %v415 = vsub.s32 %v412, %v414
    %v416 = vrot.slane %v402, %v415
    %v418 = vpack.i.b16 %v409, %v409
    %v420 = vlaneseq
    %v421 = vshrl.u32 %v420, 7
    %v422 = vsub.s32 0, %v421
    %v423 = vrot.slane %v418, %v422
    %v425 = vpack.i.b16 %v416, %v416
    %v427 = vlaneseq
    %v428 = vshrl.u32 %v427, 7
    %v429 = vsub.s32 0, %v428
    %v430 = vrot.slane %v425, %v429
    %v431 = vadd.bf16 %v391, %v423
    %v432 = vadd.bf16 %v392, %v430
    %v433 = vmax.bf16 %v431, 0
    %v434 = vmax.bf16 %v432, 0
    %v435 = vld [vmem:[#allocation4] sm:$0xf]
    %v436 = vld [vmem:[#allocation4 + $0x4] sm:$0xf]
    %v437 = vld [vmem:[#allocation4 + $0x8] sm:$0xf]
    %v438 = vld [vmem:[#allocation4 + $0xc] sm:$0xf]
    %v439 = vld [vmem:[#allocation4 + $0x10] sm:$0xf]
    %v440 = vld [vmem:[#allocation4 + $0x14] sm:$0xf]
    %v441 = vld [vmem:[#allocation4 + $0x18] sm:$0xf]
    %v442 = vld [vmem:[#allocation4 + $0x1c] sm:$0xf]
    %v443 = vld [vmem:[#allocation4 + $0x20] sm:$0xf]
    %v444 = vld [vmem:[#allocation4 + $0x24] sm:$0xf]
    %v445 = vld [vmem:[#allocation4 + $0x28] sm:$0xf]
    %v446 = vld [vmem:[#allocation4 + $0x2c] sm:$0xf]
    %v447 = vld [vmem:[#allocation4 + $0x30] sm:$0xf]
    %v448 = vld [vmem:[#allocation4 + $0x34] sm:$0xf]
    %v449 = vld [vmem:[#allocation4 + $0x38] sm:$0xf]
    %v450 = vld [vmem:[#allocation4 + $0x3c] sm:$0xf]
    %v451 = vld [vmem:[#allocation4 + $0x40] sm:$0xf]
    %v452 = vld [vmem:[#allocation4 + $0x44] sm:$0xf]
    %v453 = vld [vmem:[#allocation4 + $0x48] sm:$0xf]
    %v454 = vld [vmem:[#allocation4 + $0x4c] sm:$0xf]
    %v455 = vld [vmem:[#allocation4 + $0x50] sm:$0xf]
    %v456 = vld [vmem:[#allocation4 + $0x54] sm:$0xf]
    %v457 = vld [vmem:[#allocation4 + $0x58] sm:$0xf]
    %v458 = vld [vmem:[#allocation4 + $0x5c] sm:$0xf]
    %v459 = vld [vmem:[#allocation4 + $0x60] sm:$0xf]
    %v460 = vld [vmem:[#allocation4 + $0x64] sm:$0xf]
    %v461 = vld [vmem:[#allocation4 + $0x68] sm:$0xf]
    %v462 = vld [vmem:[#allocation4 + $0x6c] sm:$0xf]
    %v463 = vld [vmem:[#allocation4 + $0x70] sm:$0xf]
    %v464 = vld [vmem:[#allocation4 + $0x74] sm:$0xf]
    %v465 = vld [vmem:[#allocation4 + $0x78] sm:$0xf]
    %v466 = vld [vmem:[#allocation4 + $0x7c] sm:$0xf]
    %v467 = vld [vmem:[%s6] sm:$0x1]
    %v469 = vlaneseq
    %v470 = vshrl.u32 %v469, 7
    %v471 = vsub.s32 0, %v470
    %v472 = vrot.slane %v467, %v471
    %v506 = vunpack.c.l.b16 %v435
    %v507 = vunpack.c.l.b16 %v436
    %v508 = vunpack.c.l.b16 %v437
    %v509 = vunpack.c.l.b16 %v438
    %v510 = vunpack.c.l.b16 %v439
    %v511 = vunpack.c.l.b16 %v440
    %v512 = vunpack.c.l.b16 %v441
    %v513 = vunpack.c.l.b16 %v442
    %v514 = vunpack.c.l.b16 %v443
    %v515 = vunpack.c.l.b16 %v444
    %v516 = vunpack.c.l.b16 %v445
    %v517 = vunpack.c.l.b16 %v446
    %v518 = vunpack.c.l.b16 %v447
    %v519 = vunpack.c.l.b16 %v448
    %v520 = vunpack.c.l.b16 %v449
    %v521 = vunpack.c.l.b16 %v450
    %v522 = vunpack.c.l.b16 %v451
    %v523 = vunpack.c.l.b16 %v452
    %v524 = vunpack.c.l.b16 %v453
    %v525 = vunpack.c.l.b16 %v454
    %v526 = vunpack.c.l.b16 %v455
    %v527 = vunpack.c.l.b16 %v456
    %v528 = vunpack.c.l.b16 %v457
    %v529 = vunpack.c.l.b16 %v458
    %v530 = vunpack.c.l.b16 %v459
    %v531 = vunpack.c.l.b16 %v460
    %v532 = vunpack.c.l.b16 %v461
    %v533 = vunpack.c.l.b16 %v462
    %v534 = vunpack.c.l.b16 %v463
    %v535 = vunpack.c.l.b16 %v464
    %v536 = vunpack.c.l.b16 %v465
    %v537 = vunpack.c.l.b16 %v466
    %v538 = vpack.c.b16 %v507, %v506
    %v539 = vpack.c.b16 %v509, %v508
    %v540 = vpack.c.b16 %v511, %v510
    %v541 = vpack.c.b16 %v513, %v512
    %v542 = vpack.c.b16 %v515, %v514
    %v543 = vpack.c.b16 %v517, %v516
    %v544 = vpack.c.b16 %v519, %v518
    %v545 = vpack.c.b16 %v521, %v520
    %v546 = vpack.c.b16 %v523, %v522
    %v547 = vpack.c.b16 %v525, %v524
    %v548 = vpack.c.b16 %v527, %v526
    %v549 = vpack.c.b16 %v529, %v528
    %v550 = vpack.c.b16 %v531, %v530
    %v551 = vpack.c.b16 %v533, %v532
    %v552 = vpack.c.b16 %v535, %v534
    %v553 = vpack.c.b16 %v537, %v536
    %570 = vmatprep.subr.bf16.mxu0 0
    %571 = vmatpush1.bf16.msra.mxu0 %v545
    %572 = vmatprep.subr.bf16.mxu0 0
    %573 = vmatpush1.bf16.msra.mxu0 %v544
    %574 = vmatprep.subr.bf16.mxu0 0
    %575 = vmatpush1.bf16.msra.mxu0 %v543
    %576 = vmatprep.subr.bf16.mxu0 0
    %577 = vmatpush1.bf16.msra.mxu0 %v542
    %578 = vmatprep.subr.bf16.mxu0 0
    %579 = vmatpush1.bf16.msra.mxu0 %v541
    %580 = vmatprep.subr.bf16.mxu0 0
    %581 = vmatpush1.bf16.msra.mxu0 %v540
    %582 = vmatprep.subr.bf16.mxu0 0
    %583 = vmatpush1.bf16.msra.mxu0 %v539
    %584 = vmatprep.subr.bf16.mxu0 0
    %585 = vmatpush1.bf16.msra.mxu0 %v538
    %586 = vmatprep.subr.bf16.mxu0 0
    %587 = vmatpush2.bf16.msra.mxu0 %v553
    %588 = vmatprep.subr.bf16.mxu0 0
    %589 = vmatpush2.bf16.msra.mxu0 %v552
    %590 = vmatprep.subr.bf16.mxu0 0
    %591 = vmatpush2.bf16.msra.mxu0 %v551
    %592 = vmatprep.subr.bf16.mxu0 0
    %593 = vmatpush2.bf16.msra.mxu0 %v550
    %594 = vmatprep.subr.bf16.mxu0 0
    %595 = vmatpush2.bf16.msra.mxu0 %v549
    %596 = vmatprep.subr.bf16.mxu0 0
    %597 = vmatpush2.bf16.msra.mxu0 %v548
    %598 = vmatprep.subr.bf16.mxu0 0
    %599 = vmatpush2.bf16.msra.mxu0 %v547
    %600 = vmatprep.subr.bf16.mxu0 0
    %601 = vmatpush2.bf16.msra.mxu0 %v546
    %602 = vmatprep.mubr.bf16.mxu0 %v434
    %603 = vmatmul.mubr.bf16.gmra.mxu0 %v433
    %v604 = vpop.f32.mrf.mxu0
    %v605 = vadd.f32 %v472, %v604
    %v606 = vpop.f32.mrf.mxu0
    %v607 = vpop.f32.mrf.mxu0
    %v608 = vpop.f32.mrf.mxu0
    %609 = vdwg.mxu0
    %v610 = vtanh.pop %v605
    %v611 = vmul.f32 %v610, 2.0
    %v612 = vpack.c.bf16 %v611, %v611
    %613 = vst [vmem:[%s7] sm:$0xf] %v612
    // Predicated region
    $region38: #{ddpg_forward.1} parent=1 // pred_check
      _
    $region39: #{ddpg_forward.1} parent=1 // pred_check_branch
      %615 = sbr.rel (0) target = $region41
    $region40: #{ddpg_forward.1} parent=1 // pred_region
      _
    $region41: #{ddpg_forward.1} parent=1 // pred_fallthru
      _
    // Predicated region
    $region42: #{ddpg_forward.1} parent=1 // pred_check
      _
    $region43: #{ddpg_forward.1} parent=1 // pred_check_branch
      %617 = sbr.rel (0) target = $region45
    $region44: #{ddpg_forward.1} parent=1 // pred_region
      _
    $region45: #{ddpg_forward.1} parent=1 // pred_fallthru
      _
    %618 = vsyncpa [#allocation3], 1
    %619 = vsyncpa [#allocation5], 1

</llo_original>
